<compile_context>
chip_gen: v7x
topology: tpu7x:2x2x1
jax: 0.10.0
libtpu: 0.0.40
codegen_flags: <defaults>
</compile_context>

<pallas_src>
import functools

import jax
import jax.numpy as jnp
from jax.experimental import pallas as pl
from jax.experimental.pallas import tpu as pltpu


def _return_kernel_body(kern_ref, out_ref):
    # Pure copy of a (1, K) tile already resident in VMEM.  Correct whether or
    # not the input/output HBM alias is honored; costs a single masked vst.
    out_ref[...] = kern_ref[...]


def make_kernel_params(kernel_init=8, key=None, dtype=jnp.float32):
    """Deterministically initialize the parameter, mirroring torch.randn(K,1,1,1)."""
    if isinstance(kernel_init, int):
        if key is None:
            key = jax.random.PRNGKey(0)
        kern = jax.random.normal(key, (kernel_init, 1, 1, 1), dtype=dtype)
    else:
        kern = jnp.asarray(kernel_init, dtype=dtype).reshape(-1, 1, 1, 1)
    return kern


@functools.partial(jax.jit, static_argnames=())
def kernel_forward(kernel_param, x):
    """Equivalent of Kernel.forward(x): returns the kernel parameter (x ignored)."""
    del x  # forward ignores its input, exactly like the reference module
    K = kernel_param.shape[0]
    k2d = kernel_param.reshape(1, K)  # lane-dense: K on the lane (last) axis

    out2d = pl.pallas_call(
        _return_kernel_body,
        out_shape=jax.ShapeDtypeStruct((1, K), kernel_param.dtype),
        # Grid-less call: full-array block, no pipeline prologue/epilogue.
        in_specs=[pl.BlockSpec(memory_space=pltpu.MemorySpace.VMEM)],
        out_specs=pl.BlockSpec(memory_space=pltpu.MemorySpace.VMEM),
        # Output aliases the input buffer: the custom call becomes (nearly)
        # metadata-only — no independent HBM writeback of the parameter.
        input_output_aliases={0: 0},
    )(k2d)

    return out2d.reshape(K, 1, 1, 1)


if __name__ == "__main__":
    key = jax.random.PRNGKey(0)
    k_key, x_key = jax.random.split(key)

    kernel_param = make_kernel_params(kernel_init=8, key=k_key)

    # Example input consistent with an NCHW conv-style consumer; unused by forward.
    x = jax.random.normal(x_key, (2, 4, 16, 16), dtype=jnp.float32)

    out = kernel_forward(kernel_param, x)
    out = jax.block_until_ready(out)

    # Sanity checks: shape and exact value match of the "forward" semantics.
    assert out.shape == (8, 1, 1, 1), out.shape
    assert out.dtype == jnp.float32
    assert bool(jnp.array_equal(out, kernel_param))

    print("KERNEL_OK")
</pallas_src>

<mosaic_0001>
module attributes {stable_mosaic.version = 11 : i64} {
  func.func @_return_kernel_body(%arg0: memref<1x8xf32, #tpu.memory_space<vmem>>, %arg1: memref<1x8xf32, #tpu.memory_space<vmem>>) attributes {dimension_semantics = [], scalar_prefetch = 0 : i64, scratch_operands = 0 : i64, tpu.core_type = #tpu.core_type<tc>} {
    %c0 = arith.constant 0 : index
    %c0_0 = arith.constant 0 : index
    %0 = vector.load %arg0[%c0, %c0_0] : memref<1x8xf32, #tpu.memory_space<vmem>>, vector<1x8xf32>
    %c0_1 = arith.constant 0 : index
    %c0_2 = arith.constant 0 : index
    %1 = vector.load %arg1[%c0_1, %c0_2] : memref<1x8xf32, #tpu.memory_space<vmem>>, vector<1x8xf32>
    tpu.vector_store %arg1[%c0_1, %c0_2], %0 {strides = array<i32>} : memref<1x8xf32, #tpu.memory_space<vmem>>, vector<1x8xf32>,
    return
  }
}

</mosaic_0001>

<llo_original>
// kernel: kernel_forward.1
$region0: #{kernel_forward.1}
  #allocation0 [shape = 'u32[]', space=smem, size = 0x4, offset = 0x4, fixed_abs, tag = 'smem constant byte address 0x4 - core index']
  #allocation1 [shape = 'u32[144,128]{1,0:T(1,128)}', space=vmem, size = 0x12000, scoped, tag = 'internal scratch']
  %s0 = inlined_call_operand.vmem [shape: f32[1,8], index: 0, kind: input, shape index: {}, may-alias: {0,1}]
  %s1 = inlined_call_operand.vmem [shape: f32[1,8], index: 1, kind: output, shape index: {}, may-alias: {0,1}]
  %s2 = sld [smem:[#allocation0]]
  $region14: #{kernel_forward.1} parent=0
    _
  %s4 = ssub.s32 1, %s2
  %s5 = scalar_select 0, %s4, %s2
  // Predicated region
  $region2: #{kernel_forward.1} parent=0 // pred_check
    _
  $region3: #{kernel_forward.1} parent=0 // pred_check_branch
    %7 = sbr.rel (0) target = $region5
  $region4: #{kernel_forward.1} parent=0 // pred_region
    _
  $region5: #{kernel_forward.1} parent=0 // pred_fallthru
    _
  %v8 = vld [vmem:[%s0] sm:$0x1]
  %vm9 = vcmask 57344
  %10 = vst.msk [vmem:[%s1] sm:$0x1] %vm9, %v8
  // Predicated region
  $region6: #{kernel_forward.1} parent=0 // pred_check
    _
  $region7: #{kernel_forward.1} parent=0 // pred_check_branch
    %12 = sbr.rel (0) target = $region9
  $region8: #{kernel_forward.1} parent=0 // pred_region
    _
  $region9: #{kernel_forward.1} parent=0 // pred_fallthru
    _
  // Predicated region
  $region10: #{kernel_forward.1} parent=0 // pred_check
    _
  $region11: #{kernel_forward.1} parent=0 // pred_check_branch
    %14 = sbr.rel (0) target = $region13
  $region12: #{kernel_forward.1} parent=0 // pred_region
    _
  $region13: #{kernel_forward.1} parent=0 // pred_fallthru
    _

</llo_original>
